<compile_context>
chip_gen: v7x
topology: tpu7x:2x2x1
jax: 0.10.0
libtpu: 0.0.40
codegen_flags: <defaults>
</compile_context>

<pallas_src>
import functools

import jax
import jax.numpy as jnp
from jax.experimental import pallas as pl
from jax.experimental.pallas import tpu as pltpu


def _round_up(x, m):
    return ((x + m - 1) // m) * m


def _round_down(x, m):
    return (x // m) * m


def _cdiv(a, b):
    return -(-a // b)


def _sublane_multiple(itemsize):
    # f32 -> 8 sublanes per vreg tile, bf16 -> 16, int8/fp8 -> 32.
    return max(8, 32 // int(itemsize))


def _budgets():
    """Generation-aware (per-buffer tile budget, scoped VMEM limit) in bytes."""
    try:
        cap = getattr(pltpu.get_tpu_info(), "vmem_capacity_bytes", None)
    except Exception:  # not on TPU / API shape differs -> conservative fallback
        cap = None
    if cap is not None and cap >= 100 * 1024 * 1024:   # v5e / v6e: 128 MiB VMEM
        return 8 * 1024 * 1024, 64 * 1024 * 1024
    return 4 * 1024 * 1024, 32 * 1024 * 1024           # v7x (64 MiB) / unknown


def _largest_divisor_leq(n, cap):
    cap = max(1, min(n, cap))
    for d in range(cap, 0, -1):
        if n % d == 0:
            return d
    return 1


# Only force an extra megacore split (v7x has 2 TensorCores) when a single
# block is big enough that one extra ~0.35us grid step is noise on v5e/v6e.
_MEGACORE_SPLIT_MIN_BYTES = 256 * 1024


# ---------------------------------------------------------------------------
# Kernel B: prior=None, softmax over the channel axis (sublanes), spatial on
# lanes.  Grid = (batch_blocks [parallel], hw_split [parallel], hw_tiles
# [arbitrary reduction]).  Transpose-free for NCHW inputs.
# ---------------------------------------------------------------------------
def _hloss_cwise_kernel(x_ref, o_ref, *scratch, hw, hw_tile, nt, n_tiles_total):
    p = pl.program_id(1)
    t = pl.program_id(2)

    x = x_ref[...].astype(jnp.float32)                 # (bt, C, hw_tile)
    m = jnp.max(x, axis=1, keepdims=True)
    d = x - m
    e = jnp.exp(d)
    s = jnp.sum(e, axis=1, keepdims=True)
    num = jnp.sum(e * d, axis=1, keepdims=True)
    ent = jnp.log(s) - num / s                         # per-position entropy

    aligned = (hw % hw_tile) == 0                      # static
    last_tile = n_tiles_total - 1
    rem = hw - last_tile * hw_tile

    def _mask(v):
        # Mask lanes past the true spatial extent.  Must run BEFORE any
        # cross-lane reduction: OOB lanes of a partial block are garbage.
        lane = jax.lax.broadcasted_iota(jnp.int32, v.shape, 2)
        return jnp.where(lane < rem, v, 0.0)

    if nt == 1:
        # Single reduction step per (i, p): write the partial sum directly.
        if aligned:
            o_ref[...] = jnp.sum(ent).reshape(o_ref.shape)
        else:
            gt = p * nt + t

            @pl.when(gt != last_tile)
            def _():
                o_ref[...] = jnp.sum(ent).reshape(o_ref.shape)

            @pl.when(gt == last_tile)
            def _():
                o_ref[...] = jnp.sum(_mask(ent)).reshape(o_ref.shape)
        return

    (acc_ref,) = scratch                               # (bt, 1, hw_tile) f32

    @pl.when(t == 0)
    def _():
        acc_ref[...] = jnp.zeros_like(acc_ref)

    if aligned:
        acc_ref[...] += ent                            # lane-dense VPU add
    else:
        gt = p * nt + t

        @pl.when(gt != last_tile)
        def _():
            acc_ref[...] += ent

        @pl.when(gt == last_tile)
        def _():
            acc_ref[...] += _mask(ent)

    @pl.when(t == nt - 1)
    def _():
        # One cross-position reduce + one scalar store per (i, p).
        o_ref[...] = jnp.sum(acc_ref[...]).reshape(o_ref.shape)


def _hloss_channel_softmax(x, tile_bytes=None):
    """prior=None, x.ndim >= 3: softmax over dim=1, mean over all other dims."""
    b, c = int(x.shape[0]), int(x.shape[1])
    hw = 1
    for dsz in x.shape[2:]:
        hw *= int(dsz)
    x3 = x.reshape(b, c, hw)                           # free reshape, no transpose

    default_tb, vmem_limit = _budgets()
    tile_bytes = default_tb if tile_bytes is None else tile_bytes
    itemsize = x.dtype.itemsize
    c_sub = _round_up(c, _sublane_multiple(itemsize))  # padded sublane footprint

    if c_sub * 128 * itemsize > tile_bytes:
        # TODO(synk): add a C-tiled two-pass (max/sum pass, then entropy pass)
        # fallback for huge channel counts instead of erroring.
        raise NotImplementedError(
            f"HLoss Pallas kernel: channel count {c} too large for VMEM tiling.")

    full_hw_bytes = c_sub * _round_up(hw, 128) * itemsize   # one batch row
    if full_hw_bytes <= tile_bytes:
        # Whole spatial extent per step; block several batch rows per step but
        # keep nb >= 2 when b >= 2 so megacore (v7x) has parallel work.
        cap = max(1, min(b // 2, tile_bytes // full_hw_bytes))
        bt = _largest_divisor_leq(b, cap)
        nb = b // bt
        hw_tile = hw
        n_tiles_total = 1
        if nb == 1 and hw > 128 and full_hw_bytes >= _MEGACORE_SPLIT_MIN_BYTES:
            # b == 1: expose spatial parallelism for v7x's second TensorCore.
            hw_tile = _round_up(_cdiv(hw, 2), 128)
            n_tiles_total = _cdiv(hw, hw_tile)
    else:
        bt = 1
        nb = b
        hw_tile = _round_down(tile_bytes // (c_sub * itemsize), 128)
        n_tiles_total = _cdiv(hw, hw_tile)

    if n_tiles_total >= 2 and n_tiles_total % 2 == 0 and (nb == 1 or nb % 2 == 1):
        nsplit, nt = 2, n_tiles_total // 2             # megacore-friendly split
    else:
        nsplit, nt = 1, n_tiles_total

    cost = pl.CostEstimate(
        flops=6 * b * c * hw,
        transcendentals=b * c * hw + b * hw,
        bytes_accessed=b * c * hw * itemsize + nb * nsplit * 4,
    )

    scratch_shapes = []
    if nt > 1:
        scratch_shapes = [pltpu.VMEM((bt, 1, hw_tile), jnp.float32)]

    out = pl.pallas_call(
        functools.partial(_hloss_cwise_kernel, hw=hw, hw_tile=hw_tile, nt=nt,
                          n_tiles_total=n_tiles_total),
        out_shape=jax.ShapeDtypeStruct((nb, nsplit, 1, 1), jnp.float32),
        grid_spec=pltpu.PrefetchScalarGridSpec(
            num_scalar_prefetch=0,
            grid=(nb, nsplit, nt),
            in_specs=[pl.BlockSpec((bt, c, hw_tile),
                                   lambda i, p, t: (i, 0, p * nt + t))],
            out_specs=pl.BlockSpec((1, 1, 1, 1), lambda i, p, t: (i, p, 0, 0)),
            scratch_shapes=scratch_shapes,
        ),
        compiler_params=pltpu.CompilerParams(
            dimension_semantics=("parallel", "parallel", "arbitrary"),
            vmem_limit_bytes=vmem_limit,
        ),
        cost_estimate=cost,
    )(x3)
    return jnp.sum(out) / (b * hw)


# ---------------------------------------------------------------------------
# Kernel A: softmax over the LAST dim (lanes), rows tiled on sublanes.
# Used for the prior path and for 2-D prior=None inputs (dim=1 is last).
# Grid = (row_split [parallel], row_tiles [arbitrary reduction]).
# ---------------------------------------------------------------------------
def _hloss_rows_kernel(*refs, n_rows, tile, nt, n_tiles_total, has_prior):
    if has_prior:
        x_ref, lp_ref = refs[0], refs[1]
        rest = refs[2:]
    else:
        x_ref, lp_ref = refs[0], None
        rest = refs[1:]
    if nt == 1:
        (o_ref,) = rest
        acc_ref = None
    else:
        o_ref, acc_ref = rest

    p = pl.program_id(0)
    t = pl.program_id(1)

    x = x_ref[...].astype(jnp.float32)                 # (tile, C)
    m = jnp.max(x, axis=-1, keepdims=True)
    d = x - m
    e = jnp.exp(d)
    s = jnp.sum(e, axis=-1, keepdims=True)
    if has_prior:
        num = jnp.sum(e * (d - lp_ref[...].astype(jnp.float32)),
                      axis=-1, keepdims=True)
    else:
        num = jnp.sum(e * d, axis=-1, keepdims=True)
    ent = jnp.log(s) - num / s                         # (tile, 1)

    aligned = (n_rows % tile) == 0                     # static
    last_tile = n_tiles_total - 1
    rem = n_rows - last_tile * tile

    def _mask(v):
        # Mask rows past the true row count BEFORE the cross-row reduce.
        row = jax.lax.broadcasted_iota(jnp.int32, v.shape, 0)
        return jnp.where(row < rem, v, 0.0)

    if nt == 1:
        if aligned:
            o_ref[...] = jnp.sum(ent).reshape(o_ref.shape)
        else:
            gt = p * nt + t

            @pl.when(gt != last_tile)
            def _():
                o_ref[...] = jnp.sum(ent).reshape(o_ref.shape)

            @pl.when(gt == last_tile)
            def _():
                o_ref[...] = jnp.sum(_mask(ent)).reshape(o_ref.shape)
        return

    @pl.when(t == 0)
    def _():
        acc_ref[...] = jnp.zeros_like(acc_ref)

    if aligned:
        acc_ref[...] += ent                            # VPU add, no per-step XLU
    else:
        gt = p * nt + t

        @pl.when(gt != last_tile)
        def _():
            acc_ref[...] += ent

        @pl.when(gt == last_tile)
        def _():
            acc_ref[...] += _mask(ent)

    @pl.when(t == nt - 1)
    def _():
        o_ref[...] = jnp.sum(acc_ref[...]).reshape(o_ref.shape)


def _hloss_lastdim_softmax(rows, log_prior=None, tile_bytes=None):
    n_rows, c = int(rows.shape[0]), int(rows.shape[1])
    itemsize = rows.dtype.itemsize
    default_tb, vmem_limit = _budgets()
    tile_bytes = default_tb if tile_bytes is None else tile_bytes

    # Budget with the PADDED footprint: a (rows, C) block physically occupies
    # (round_up(rows, 8), round_up(C, 128)) elements in VMEM.
    # TODO(synk): for tiny C (< 128) a channel-on-sublane relayout would avoid
    # the 128-lane padding, but it needs a physical transpose of the input.
    c_lanes = _round_up(c, 128)
    row_bytes = c_lanes * itemsize
    if 8 * row_bytes > tile_bytes:
        # TODO(synk): add a C-tiled two-pass fallback for huge class counts.
        raise NotImplementedError(
            f"HLoss Pallas kernel: class count {c} too large for VMEM tiling.")
    max_rows = _round_down(tile_bytes // row_bytes, 8)

    if n_rows <= max_rows:
        tile = n_rows
        n_tiles = 1
        if n_rows > 8 and n_rows * row_bytes >= _MEGACORE_SPLIT_MIN_BYTES:
            # Expose a second tile so v7x's second TensorCore has work.
            tile = _round_up(_cdiv(n_rows, 2), 8)
            n_tiles = _cdiv(n_rows, tile)
    else:
        tile = max_rows
        n_tiles = _cdiv(n_rows, tile)

    if n_tiles >= 2 and n_tiles % 2 == 0:
        nsplit, nt = 2, n_tiles // 2                   # megacore parallel axis
    else:
        nsplit, nt = 1, n_tiles

    has_prior = log_prior is not None
    in_specs = [pl.BlockSpec((tile, c), lambda p, t: (p * nt + t, 0))]
    args = [rows]
    if has_prior:
        in_specs.append(pl.BlockSpec((1, c), lambda p, t: (0, 0)))
        args.append(log_prior)

    cost = pl.CostEstimate(
        flops=(7 if has_prior else 6) * n_rows * c,
        transcendentals=n_rows * c + n_rows,
        bytes_accessed=(n_rows * c * itemsize
                        + (nsplit * nt * c * 4 if has_prior else 0)
                        + nsplit * 4),
    )

    scratch_shapes = []
    if nt > 1:
        scratch_shapes = [pltpu.VMEM((tile, 1), jnp.float32)]

    out = pl.pallas_call(
        functools.partial(_hloss_rows_kernel, n_rows=n_rows, tile=tile, nt=nt,
                          n_tiles_total=n_tiles, has_prior=has_prior),
        out_shape=jax.ShapeDtypeStruct((nsplit, 1, 1), jnp.float32),
        grid_spec=pltpu.PrefetchScalarGridSpec(
            num_scalar_prefetch=0,
            grid=(nsplit, nt),
            in_specs=in_specs,
            out_specs=pl.BlockSpec((1, 1, 1), lambda p, t: (p, 0, 0)),
            scratch_shapes=scratch_shapes,
        ),
        compiler_params=pltpu.CompilerParams(
            dimension_semantics=("parallel", "arbitrary"),
            vmem_limit_bytes=vmem_limit,
        ),
        cost_estimate=cost,
    )(*args)
    return jnp.sum(out) / n_rows


# ---------------------------------------------------------------------------
# Public entry point matching HLoss.forward.
# ---------------------------------------------------------------------------
def hloss(x, prior=None):
    """Pallas implementation of HLoss.forward."""
    if prior is None:
        if x.ndim >= 3:
            return _hloss_channel_softmax(x)           # transpose-free NCHW path
        return _hloss_lastdim_softmax(x)               # 2-D: dim=1 is already last
    c = int(x.shape[-1])
    rows = x.reshape(-1, c)
    log_prior = jnp.log(prior).reshape(-1, c).astype(jnp.float32)
    if log_prior.shape[0] != 1:
        # TODO(synk): per-row priors (prior.numel() > C) need a per-row prior
        # gather inside the kernel; only the broadcast (numel == C) case is done.
        raise NotImplementedError(
            "HLoss Pallas kernel supports prior with exactly C elements.")
    return _hloss_lastdim_softmax(rows, log_prior)


def _hloss_ref(x, prior=None):
    """Plain-JAX reference matching the PyTorch module."""
    if prior is None:
        b = jax.nn.softmax(x, axis=1) * jax.nn.log_softmax(x, axis=1)
        return jnp.mean(-jnp.sum(b, axis=1))
    p = jax.nn.softmax(x, axis=-1)
    b = p * (jax.nn.log_softmax(x, axis=-1)
             - jnp.log(prior).reshape(-1, x.shape[-1]))
    return jnp.mean(-jnp.sum(b, axis=-1))


if __name__ == "__main__":
    key = jax.random.PRNGKey(0)
    k1, k2, k3, k4, k5, k6 = jax.random.split(key, 6)

    def _check(out, ref):
        out = jax.block_until_ready(out)
        assert jnp.allclose(out, ref, atol=1e-5, rtol=1e-5), (out, ref)

    # Branch 1: prior=None, NCHW input, softmax over channel dim.
    x = jax.random.normal(k1, (2, 4, 16, 16), dtype=jnp.float32)
    _check(hloss(x), _hloss_ref(x))

    # Branch 1b: odd channel/spatial sizes.
    xb = jax.random.normal(k4, (2, 5, 12, 12), dtype=jnp.float32)
    _check(hloss(xb), _hloss_ref(xb))

    # Branch 2: explicit prior over the last dim (logits of shape (B, S, C)).
    x2 = jax.random.normal(k2, (2, 8, 32), dtype=jnp.float32)
    prior = jax.nn.softmax(jax.random.normal(k3, (32,), dtype=jnp.float32))
    _check(hloss(x2, prior), _hloss_ref(x2, prior))

    # Forced-tiny tile budgets: exercise the multi-tile reduction (scratch
    # accumulator), the pl.when-guarded partial-tile masks, and the 2-way
    # parallel split at small shapes.
    _check(_hloss_channel_softmax(x, tile_bytes=4096), _hloss_ref(x))       # aligned tiles
    _check(_hloss_channel_softmax(xb, tile_bytes=4096), _hloss_ref(xb))     # masked last tile
    x1 = jax.random.normal(k5, (1, 5, 12, 12), dtype=jnp.float32)
    _check(_hloss_channel_softmax(x1, tile_bytes=4096), _hloss_ref(x1))     # nsplit=2, nt=1, mask
    rows2 = jax.random.normal(k6, (18, 32), dtype=jnp.float32)
    lp = jnp.log(prior).reshape(1, 32)
    _check(_hloss_lastdim_softmax(rows2, lp, tile_bytes=4096),
           _hloss_ref(rows2.reshape(1, 18, 32), prior))                     # rows mask + scratch

    print("KERNEL_OK")
</pallas_src>

<mosaic_0001>
module attributes {stable_mosaic.version = 11 : i64} {
  func.func @_hloss_cwise_kernel(%arg0: i32, %arg1: i32, %arg2: i32, %arg3: memref<1x4x256xf32, #tpu.memory_space<vmem>>, %arg4: memref<1x1x1x1xf32, #tpu.memory_space<vmem>>) attributes {dimension_semantics = [#tpu.dimension_semantics<parallel>, #tpu.dimension_semantics<parallel>, #tpu.dimension_semantics<arbitrary>], iteration_bounds = array<i64: 2, 1, 1>, scalar_prefetch = 0 : i64, scratch_operands = 0 : i64, tpu.core_type = #tpu.core_type<tc>, window_params = [{transform_indices = @transform_0, window_bounds = array<i64: 1, 4, 256>}, {transform_indices = @transform_1, window_bounds = array<i64: 1, 1, 1, 1>}]} {
    %c0 = arith.constant 0 : index
    %c0_0 = arith.constant 0 : index
    %c0_1 = arith.constant 0 : index
    %0 = vector.load %arg3[%c0, %c0_0, %c0_1] : memref<1x4x256xf32, #tpu.memory_space<vmem>>, vector<1x4x256xf32>
    %cst = arith.constant dense<0xFF800000> : vector<1x256xf32>
    %1 = vector.multi_reduction <maximumf>, %0, %cst [1] : vector<1x4x256xf32> to vector<1x256xf32>
    %2 = vector.shape_cast %1 : vector<1x256xf32> to vector<1x1x256xf32>
    %3 = vector.broadcast %2 : vector<1x1x256xf32> to vector<1x4x256xf32>
    %4 = arith.subf %0, %3 : vector<1x4x256xf32>
    %5 = math.exp %4 : vector<1x4x256xf32>
    %cst_2 = arith.constant dense<0.000000e+00> : vector<1x256xf32>
    %6 = vector.multi_reduction <add>, %5, %cst_2 [1] : vector<1x4x256xf32> to vector<1x256xf32>
    %7 = vector.shape_cast %6 : vector<1x256xf32> to vector<1x1x256xf32>
    %8 = arith.mulf %5, %4 : vector<1x4x256xf32>
    %cst_3 = arith.constant dense<0.000000e+00> : vector<1x256xf32>
    %9 = vector.multi_reduction <add>, %8, %cst_3 [1] : vector<1x4x256xf32> to vector<1x256xf32>
    %10 = vector.shape_cast %9 : vector<1x256xf32> to vector<1x1x256xf32>
    %11 = math.log %7 : vector<1x1x256xf32>
    %12 = arith.divf %10, %7 : vector<1x1x256xf32>
    %13 = arith.subf %11, %12 : vector<1x1x256xf32>
    %14 = vector.shape_cast %13 : vector<1x1x256xf32> to vector<1x1x1x256xf32>
    %cst_4 = arith.constant dense<0.000000e+00> : vector<1xf32>
    %15 = vector.multi_reduction <add>, %14, %cst_4 [1, 2, 3] : vector<1x1x1x256xf32> to vector<1xf32>
    %16 = vector.shape_cast %15 : vector<1xf32> to vector<1x1x1x1xf32>
    %17 = vector.extract %16[0, 0, 0, 0] : f32 from vector<1x1x1x1xf32>
    %18 = vector.broadcast %17 : f32 to vector<1x1x1x1xf32>
    %c0_5 = arith.constant 0 : index
    %c0_6 = arith.constant 0 : index
    %c0_7 = arith.constant 0 : index
    %c0_8 = arith.constant 0 : index
    %19 = vector.load %arg4[%c0_5, %c0_6, %c0_7, %c0_8] : memref<1x1x1x1xf32, #tpu.memory_space<vmem>>, vector<1x1x1x1xf32>
    tpu.vector_store %arg4[%c0_5, %c0_6, %c0_7, %c0_8], %18 {strides = array<i32>} : memref<1x1x1x1xf32, #tpu.memory_space<vmem>>, vector<1x1x1x1xf32>,
    return
  }
  func.func @transform_0(%arg0: i32, %arg1: i32, %arg2: i32) -> (i32, i32, i32) {
    %c1_i32 = arith.constant 1 : i32
    %0 = arith.muli %arg1, %c1_i32 : i32
    %1 = arith.addi %0, %arg2 : i32
    %c0_i32 = arith.constant 0 : i32
    %c0_i32_0 = arith.constant 0 : i32
    return %arg0, %c0_i32, %1 : i32, i32, i32
  }
  func.func @transform_1(%arg0: i32, %arg1: i32, %arg2: i32) -> (i32, i32, i32, i32) {
    %c0_i32 = arith.constant 0 : i32
    %c0_i32_0 = arith.constant 0 : i32
    %c0_i32_1 = arith.constant 0 : i32
    return %arg0, %arg1, %c0_i32, %c0_i32_0 : i32, i32, i32, i32
  }
}

</mosaic_0001>

<llo_original>
// kernel: tpu_custom_call.1
$region0: #{tpu_custom_call.1}
  #allocation0 [shape = 'u32[]', space=smem, size = 0x4, offset = 0x4, fixed_abs, tag = 'smem constant byte address 0x4 - core index']
  #allocation1 [shape = 'u32[144,128]{1,0:T(1,128)}', space=vmem, size = 0x12000, scoped, tag = 'internal scratch']
  %s0 = inlined_call_operand.hbm [shape: f32[2,4,256], index: 0, kind: input, shape index: {}]
  %s1 = inlined_call_operand.vmem [shape: f32[2,1,1,1], index: 1, kind: output, shape index: {}]
  %s2 = sld [smem:[#allocation0]]
  $region41: #{tpu_custom_call.1} parent=0
    _
  %s4 = ssub.s32 1, %s2
  %s5 = scalar_select 0, %s4, %s2
  $region1: #{tpu_custom_call.1} parent=0
    #allocation2 [shape = 'u8[8192]{0}', space=vmem, size = 0x2000, scoped, tag = 'input window, operand 0']
    #allocation3 [shape = 's32[2]{0}', space=sflag, size = 0x8, scoped, tag = 'scoped memory for tpu_custom_call.1']
    %6 = vsyncpa [#allocation3], 0
    %s7 = scalar_lea.sflag [#allocation3], 1
    %8 = vsyncpa %s7, 0
    loop: start=0, step=1, limit=4
    $region2: #{tpu_custom_call.1} parent=1 // loop_pre_header
      _
    $region3: #{tpu_custom_call.1} parent=1 // loop_header
      %s10 = sphi 0, %s14
      %p11 = scmp.ge.s32.totalorder %s10, 4
      %s17 = sphi 0, %s36
      %s18 = sphi 0, %s32
      %s19 = sphi 0, %s28
      %s20 = sphi 0, %s17
      %s21 = sphi 0, %s18
      %s22 = sphi 0, %s19
      %s23 = sphi 0, %s20
      %s24 = sphi 0, %s21
      %s25 = sphi 0, %s22
      %s43 = sphi 0, %s45
      %s46 = sphi 0, %s43
      %s47 = sphi 0, %s46
      %s63 = sphi 0, %s47
      %s71 = sphi 0, %s73
      %s74 = sphi 0, %s71
      %s75 = sphi 0, %s74
      %s91 = sphi 0, %s75
    $region4: #{tpu_custom_call.1} parent=1 // loop_header_branch
      %13 = sbr.rel (%p11) target = $region8
    $region5: #{tpu_custom_call.1} parent=1 // loop_body
      %s15 = ssub.s32 %s10, 1
      %s16 = ssub.s32 %s10, 2
      %s26 = sadd.s32 1, %s19
      %p27 = scmp.ge.s32.totalorder %s26, 1
      %s28 = scalar_select %p27, 0, %s26
      %s29 = sadd.s32 1, %s18
      %s30 = scalar_select %p27, %s29, %s18
      %p31 = scmp.ge.s32.totalorder %s30, 1
      %s32 = scalar_select %p31, 0, %s30
      %s33 = sadd.s32 1, %s17
      %s34 = scalar_select %p31, %s33, %s17
      %p35 = scmp.ge.s32.totalorder %s34, 2
      %s36 = scalar_select %p35, 0, %s34
      %s37 = sadd.s32 %s18, %s19
      %s38 = sadd.s32 %s32, %s28
      %s39 = ssub.s32 %s17, %s36
      %s40 = ssub.s32 %s37, %s38
      %s41 = sor.u32 %s39, %s40
      %p42 = scmp.eq.s32.totalorder %s41, 0
      %s44 = sadd.s32 %s43, 1
      %s45 = scalar_select %p42, %s43, %s44
      %p48 = pneg %p42
      %p49 = scmp.eq.s32.totalorder %s10, 1
      %p50 = por %p48, %p49
      %p51 = scmp.ne.s32.totalorder %s43, %s46
      %p52 = scmp.eq.s32.totalorder %s10, 0
      %p53 = por %p51, %p52
      %p54 = scmp.ne.s32.totalorder %s43, %s46
      %p55 = scmp.eq.s32.totalorder %s15, 1
      %p56 = por %p54, %p55
      %p57 = scmp.ne.s32.totalorder %s46, %s47
      %p58 = scmp.eq.s32.totalorder %s15, 0
      %p59 = por %p57, %p58
      %p60 = scmp.ne.s32.totalorder %s46, %s47
      %p61 = scmp.eq.s32.totalorder %s16, 1
      %p62 = por %p60, %p61
      %p64 = scmp.ne.s32.totalorder %s47, %s63
      %p65 = scmp.eq.s32.totalorder %s16, 0
      %p66 = por %p64, %p65
      %s67 = ssub.s32 %s17, %s36
      %s68 = ssub.s32 %s18, %s32
      %s69 = sor.u32 %s67, %s68
      %p70 = scmp.eq.s32.totalorder %s69, 0
      %s72 = sadd.s32 %s71, 1
      %s73 = scalar_select %p70, %s71, %s72
      %p76 = pneg %p70
      %p77 = scmp.eq.s32.totalorder %s10, 1
      %p78 = por %p76, %p77
      %p79 = scmp.ne.s32.totalorder %s71, %s74
      %p80 = scmp.eq.s32.totalorder %s10, 0
      %p81 = por %p79, %p80
      %p82 = scmp.ne.s32.totalorder %s71, %s74
      %p83 = scmp.eq.s32.totalorder %s15, 1
      %p84 = por %p82, %p83
      %p85 = scmp.ne.s32.totalorder %s74, %s75
      %p86 = scmp.eq.s32.totalorder %s15, 0
      %p87 = por %p85, %p86
      %p88 = scmp.ne.s32.totalorder %s74, %s75
      %p89 = scmp.eq.s32.totalorder %s16, 1
      %p90 = por %p88, %p89
      %p92 = scmp.ne.s32.totalorder %s75, %s91
      %p93 = scmp.eq.s32.totalorder %s16, 0
      %p94 = por %p92, %p93
      %p95 = scmp.le.s32.totalorder 1, %s10
      %p96 = scmp.lt.s32.totalorder %s10, 3
      %p97 = pnand %p95, %p96
      %p98 = pneg %p97
      // Predicated region
      $region9: #{tpu_custom_call.1} parent=5 // pred_check
        _
      $region10: #{tpu_custom_call.1} parent=5 // pred_check_branch
        %100 = sbr.rel (%p97) target = $region12
      $region11: #{tpu_custom_call.1} parent=5 // pred_region
        %s101 = ssub.s32 %s10, 1
      $region12: #{tpu_custom_call.1} parent=5 // pred_fallthru
        _
      %p102 = scmp.lt.s32.totalorder %s10, 2
      // Predicated region
      $region13: #{tpu_custom_call.1} parent=5 // pred_check
        %p103 = pneg %p102
      $region14: #{tpu_custom_call.1} parent=5 // pred_check_branch
        %105 = sbr.rel (%p103) target = $region16
      $region15: #{tpu_custom_call.1} parent=5 // pred_region
        // Predicated region
        $region17: #{tpu_custom_call.1} parent=15 // pred_check
          %p106 = pneg %p53
        $region18: #{tpu_custom_call.1} parent=15 // pred_check_branch
          %108 = sbr.rel (%p106) target = $region20
        $region19: #{tpu_custom_call.1} parent=15 // pred_region
          %s109 = sand.u32 %s43, 1
          %s110 = scalar_lea.sflag [#allocation3], %s109
          %s111 = sand.u32 %s43, 1
          %s112 = smul.addr %s111, 8
          %s113 = scalar_lea.vmem [#allocation2], %s112
          %s114 = sadd.s32 %s18, %s19
          %s115 = smul.u32 2, %s114
          %s117 = ssub.s32 128, 128
          %118 = vsyncadd %s110, %s117
          %s119 = smul.addr %s17, 2
          %s120 = sadd.s32 %s115, %s119
          %s121 = smul.addr %s120, 64
          %s122 = scalar_lea.hbm %s0, %s121
          %s124 = sshll.u32 %s113, 4
          %s125 = int_to_ptr.vmem [resolvable:$true] %s124
          %127 = dma.hbm_to_vmem [thread:$0]  %s122, 128, %s125, %s110
        $region20: #{tpu_custom_call.1} parent=15 // pred_fallthru
          _
      $region16: #{tpu_custom_call.1} parent=5 // pred_fallthru
        _
      %p128 = scmp.le.s32.totalorder 1, %s10
      %p129 = scmp.lt.s32.totalorder %s10, 3
      %p130 = pnand %p128, %p129
      %p131 = pneg %p130
      // Predicated region
      $region21: #{tpu_custom_call.1} parent=5 // pred_check
        _
      $region22: #{tpu_custom_call.1} parent=5 // pred_check_branch
        %133 = sbr.rel (%p130) target = $region24
      $region23: #{tpu_custom_call.1} parent=5 // pred_region
        %s134 = ssub.s32 %s10, 1
        %s135 = sand.u32 %s46, 1
        %s136 = scalar_lea.sflag [#allocation3], %s135
        %s137 = sand.u32 %s46, 1
        %s138 = smul.addr %s137, 8
        %s139 = scalar_lea.vmem [#allocation2], %s138
        // Predicated region
        $region25: #{tpu_custom_call.1} parent=23 // pred_check
          %p140 = pneg %p59
        $region26: #{tpu_custom_call.1} parent=23 // pred_check_branch
          %142 = sbr.rel (%p140) target = $region28
        $region27: #{tpu_custom_call.1} parent=23 // pred_region
          %143 = dma.done %s136, 128
        $region28: #{tpu_custom_call.1} parent=23 // pred_fallthru
          _
        %s144 = sand.u32 %s46, 1
        %s145 = scalar_lea.sflag [#allocation3], %s144
        %s146 = sand.u32 %s46, 1
        %s147 = smul.addr %s146, 8
        %s148 = scalar_lea.vmem [#allocation2], %s147
        %p149 = pneg %p59
        %p150 = pneg %p56
        %p151 = pneg %p87
        %p152 = pneg %p84
        %p153 = scmp.lt.s32.totalorder %s20, 1
        %s154 = scalar_select %p153, %s20, 1
        %p155 = scmp.lt.s32.totalorder %s21, 0
        %s156 = scalar_select %p155, %s21, 0
        %s157 = sadd.s32 %s156, %s154
        %s158 = scalar_lea.vmem %s1, %s157
        %s159 = sadd.s32 %s21, %s22
        %s160 = smul.u32 2, %s159
        %p161 = scmp.lt.s32.totalorder %s20, 1
        %s162 = scalar_select %p161, %s20, 1
        %p163 = scmp.lt.s32.totalorder %s21, 0
        %s164 = scalar_select %p163, %s21, 0
        %s165 = sadd.s32 %s164, %s162
        %s166 = scalar_lea.vmem %s1, %s165
        %v167 = vld [vmem:[%s139] sm:$0xff]
        %v169 = vcombine.high %v167, %v167
        %vm171 = vcmask 1043456
        %v172 = vsel %vm171, %v167, -inf
        %v173 = vrot.slane %v172, 4
        %v174 = vmax.f32 %v172, %v173
        %v175 = vrot.slane %v174, 2
        %v176 = vmax.f32 %v174, %v175
        %v177 = vrot.slane %v176, 1
        %v178 = vmax.f32 %v176, %v177
        %v179 = vsel %vm171, %v169, -inf
        %v180 = vrot.slane %v179, 4
        %v181 = vmax.f32 %v179, %v180
        %v182 = vrot.slane %v181, 2
        %v183 = vmax.f32 %v181, %v182
        %v184 = vrot.slane %v183, 1
        %v185 = vmax.f32 %v183, %v184
        %v188 = vcombine.low %v178, %v185
        %v190 = vsub.f32 %v167, %v188
        %v191 = vmul.f32 %v190, 1.442695
        %v192 = vpow.pop %v191
        %v194 = vcombine.high %v192, %v192
        %v196 = vsel %vm171, %v192, 0.0
        %v197 = vrot.slane %v196, 4
        %v198 = vadd.f32 %v196, %v197
        %v199 = vrot.slane %v198, 2
        %v200 = vadd.f32 %v198, %v199
        %v201 = vrot.slane %v200, 1
        %v202 = vadd.f32 %v200, %v201
        %v203 = vsel %vm171, %v194, 0.0
        %v204 = vrot.slane %v203, 4
        %v205 = vadd.f32 %v203, %v204
        %v206 = vrot.slane %v205, 2
        %v207 = vadd.f32 %v205, %v206
        %v208 = vrot.slane %v207, 1
        %v209 = vadd.f32 %v207, %v208
        %v210 = vmul.f32 %v192, %v190
        %v212 = vcombine.high %v210, %v210
        %v214 = vsel %vm171, %v210, 0.0
        %v215 = vrot.slane %v214, 4
        %v216 = vadd.f32 %v214, %v215
        %v217 = vrot.slane %v216, 2
        %v218 = vadd.f32 %v216, %v217
        %v219 = vrot.slane %v218, 1
        %v220 = vadd.f32 %v218, %v219
        %v221 = vsel %vm171, %v212, 0.0
        %v222 = vrot.slane %v221, 4
        %v223 = vadd.f32 %v221, %v222
        %v224 = vrot.slane %v223, 2
        %v225 = vadd.f32 %v223, %v224
        %v226 = vrot.slane %v225, 1
        %v227 = vadd.f32 %v225, %v226
        %v228 = vlog2.pop %v202
        %v229 = vmul.f32 %v228, 0.6931472
        %v230 = vlog2.pop %v209
        %v231 = vmul.f32 %v230, 0.6931472
        %v232 = vrcp.pop %v202
        %v233 = vmul.f32 %v220, %v232
        %v234 = vrcp.pop %v209
        %v235 = vmul.f32 %v227, %v234
        %v236 = vsub.f32 %v229, %v233
        %v237 = vsub.f32 %v231, %v235
        %vm238 = vcmask 1040384
        %v239 = vsel %vm238, %v236, 0.0
        %v240 = vsel %vm238, %v237, 0.0
        %v241 = vadd.f32 %v239, %v240
        %242 = vadd.xlane.f32.xlu0 %v241
        %v243 = vpop.xlane.xlu0 %242
        %v244 = vrot.slane %v243, 4
        %v245 = vadd.f32 %v243, %v244
        %v246 = vrot.slane %v245, 2
        %v247 = vadd.f32 %v245, %v246
        %v248 = vrot.slane %v247, 1
        %v249 = vadd.f32 %v247, %v248
        %s250 = vtos %v249
        %v251 = vstv %s250
        %vm252 = vcmask 0
        %253 = vst.msk [vmem:[%s166] sm:$0x1] %vm252, %v251
        %p254 = scmp.lt.s32.totalorder %s20, 1
        %s255 = scalar_select %p254, %s20, 1
        %p256 = scmp.lt.s32.totalorder %s21, 0
        %s257 = scalar_select %p256, %s21, 0
        %s258 = sadd.s32 %s257, %s255
        %s259 = scalar_lea.vmem %s1, %s258
        // Predicated region
        $region29: #{tpu_custom_call.1} parent=23 // pred_check
          %p260 = pneg %p84
        $region30: #{tpu_custom_call.1} parent=23 // pred_check_branch
          %262 = sbr.rel (%p260) target = $region32
        $region31: #{tpu_custom_call.1} parent=23 // pred_region
          _
        $region32: #{tpu_custom_call.1} parent=23 // pred_fallthru
          _
      $region24: #{tpu_custom_call.1} parent=5 // pred_fallthru
        _
      %p263 = scmp.le.s32.totalorder 2, %s10
      // Predicated region
      $region33: #{tpu_custom_call.1} parent=5 // pred_check
        %p264 = pneg %p263
      $region34: #{tpu_custom_call.1} parent=5 // pred_check_branch
        %266 = sbr.rel (%p264) target = $region36
      $region35: #{tpu_custom_call.1} parent=5 // pred_region
        %s267 = ssub.s32 %s10, 2
        // Predicated region
        $region37: #{tpu_custom_call.1} parent=35 // pred_check
          %p268 = pneg %p90
        $region38: #{tpu_custom_call.1} parent=35 // pred_check_branch
          %270 = sbr.rel (%p268) target = $region40
        $region39: #{tpu_custom_call.1} parent=35 // pred_region
          %p271 = scmp.lt.s32.totalorder %s23, 1
          %s272 = scalar_select %p271, %s23, 1
          %p273 = scmp.lt.s32.totalorder %s24, 0
          %s274 = scalar_select %p273, %s24, 0
          %s275 = sadd.s32 %s274, %s272
          %s276 = scalar_lea.vmem %s1, %s275
        $region40: #{tpu_custom_call.1} parent=35 // pred_fallthru
          _
      $region36: #{tpu_custom_call.1} parent=5 // pred_fallthru
        _
    $region6: #{tpu_custom_call.1} parent=1 // loop_footer
      %s14 = sadd.s32 1, %s10
    $region7: #{tpu_custom_call.1} parent=1 // loop_footer_branch
      %9 = sbr.rel target = $region3
    $region8: #{tpu_custom_call.1} parent=1 // loop_exit
      _
    %277 = vsyncpa [#allocation3], 1
    %s278 = scalar_lea.sflag [#allocation3], 1
    %279 = vsyncpa %s278, 1

</llo_original>
